<compile_context>
chip_gen: v6e
topology: v6e:2x2x1
jax: 0.10.0
libtpu: 0.0.40
codegen_flags: <defaults>
</compile_context>

<pallas_src>
import functools

import jax
import jax.numpy as jnp
from jax.experimental import pallas as pl
from jax.experimental.pallas import tpu as pltpu


# ---------------- sub-pixel tap tables (k=4, stride=2, pad=1) ----------------
# Down conv (stride-2 Conv2d): input row 2a+py feeds output row ho with a = ho + dy, kernel row kh.
_DOWN_TAPS = {0: ((0, 1), (1, 3)), 1: ((-1, 0), (0, 2))}    # py -> ((dy, kh), ...)
# Up conv (stride-2 ConvTranspose2d): output row 2a+py reads input row a + dy with kernel row ky.
_UP_TAPS = {0: ((0, 1), (-1, 3)), 1: ((0, 2), (1, 0))}      # py -> ((dy, ky), ...)
_PARITIES = ((0, 0), (0, 1), (1, 0), (1, 1))
_SHIFTS = tuple((dy, dx) for dy in (-1, 0, 1) for dx in (-1, 0, 1))
_SHIFT_IDX = {s: i for i, s in enumerate(_SHIFTS)}

_BN_EPS = 1e-5
_MXU_DTYPE = jnp.bfloat16    # bf16 MXU inputs, f32 accumulation (perf review item 3)


def _round_up(x, m):
    return (x + m - 1) // m * m


# ---------------- fused Pallas kernel ----------------

def _fused_block_kernel(xpar_ref, wd_ref, wu_ref, mask_ref, avg_ref,
                        gamma_ref, beta_ref, o_ref, *, wo):
    m = o_ref.shape[-1]

    # Hoisted boundary masks: one (1, M) f32 row per (dy, dx) shift, loaded once.
    mask_rows = [None] * len(_SHIFTS)
    for s, (dy, dx) in enumerate(_SHIFTS):
        if (dy, dx) != (0, 0):
            mask_rows[s] = mask_ref[s:s + 1, :]

    def shifted(v, dy, dx):
        # out[:, m] = v[:, m'] with m=(n,a,b), m'=(n,a+dy,b+dx); zero where out of range.
        if dy == 0 and dx == 0:
            return v
        rolled = pltpu.roll(v, shift=(-(dy * wo + dx)) % m, axis=1)   # XLU slot
        return rolled * mask_rows[_SHIFT_IDX[(dy, dx)]]               # one vmul

    # 1) LeakyReLU(0.2) prologue on the parity-split input.
    xp = xpar_ref[...]                                    # (2, 2, Cp, M)
    xr = jnp.where(xp >= 0, xp, 0.2 * xp)

    # 2) stride-2 Conv2d(k=4, p=1) as ONE GEMM over an in-register im2col:
    #    16 (input-parity, tap) blocks built from lane rolls + precomputed masks.
    #    TODO(synk): at tiled/production M, write each block into a VMEM scratch ref
    #    instead of jnp.concatenate to bound vreg live ranges.
    xblocks = []
    for py in (0, 1):
        for px in (0, 1):
            plane = xr[py, px]                            # (Cp, M)
            for dy, _kh in _DOWN_TAPS[py]:
                for dx, _kw in _DOWN_TAPS[px]:
                    xblocks.append(shifted(plane, dy, dx))
    xbig = jnp.concatenate(xblocks, axis=0)               # (16*Cp, M) f32
    h1 = jnp.dot(wd_ref[...], xbig.astype(_MXU_DTYPE),
                 preferred_element_type=jnp.float32)      # (Cip, M) f32

    # 3) fused ReLU
    h1 = jnp.maximum(h1, 0.0)

    # 4) stride-2 ConvTranspose2d(k=4, p=1) as 4 sub-pixel outputs from ONE GEMM:
    #    9 shifted copies of h1 stacked along K; result rows are (channel, output parity).
    hblocks = [shifted(h1, dy, dx) for dy, dx in _SHIFTS]
    hbig = jnp.concatenate(hblocks, axis=0)               # (9*Cip, M) f32
    y = jnp.dot(wu_ref[...], hbig.astype(_MXU_DTYPE),
                preferred_element_type=jnp.float32)       # (4*C_out, M) f32

    # 5) fused, vectorized BatchNorm2d (training-mode batch stats, biased variance).
    #    Channel co owns rows 4co..4co+3 (one per output-pixel parity); avg_ref is the
    #    (4*C_out, 4*C_out) group-indicator matrix so channel sums come from one tiny MXU
    #    dot, statistics broadcast along lanes, and the store is ONE full unmasked vst.
    #    M here is exactly N*Ho*Wo (no lane padding) so inv_cnt is exact; a padded/tiled
    #    M would require masked counts / a two-pass BN.
    inv_cnt = 1.0 / (4 * m)
    gy = jnp.dot(avg_ref[...], y, preferred_element_type=jnp.float32)       # group-summed rows
    mu = jnp.sum(gy, axis=-1, keepdims=True) * inv_cnt                      # (4*C_out, 1)
    cen = y - mu
    gc2 = jnp.dot(avg_ref[...], cen * cen, preferred_element_type=jnp.float32)
    var = jnp.sum(gc2, axis=-1, keepdims=True) * inv_cnt                    # (4*C_out, 1)
    o_ref[...] = cen * jax.lax.rsqrt(var + _BN_EPS) * gamma_ref[...] + beta_ref[...]


# ---------------- wrapper: layout plumbing + single pallas_call ----------------

@jax.jit
def block_innermost_forward(x_nchw, params):
    w_down = params["w_down"]   # (C_inner, C_in, 4, 4)   Conv2d weight (OIHW)
    w_up = params["w_up"]       # (C_inner, C_out, 4, 4)  ConvTranspose2d weight (in, out, kh, kw)
    gamma = params["gamma"]     # (C_out,)
    beta = params["beta"]       # (C_out,)

    n, c_in, h, w = x_nchw.shape
    c_inner, c_out = w_down.shape[0], w_up.shape[1]
    ho, wo = h // 2, w // 2
    m = n * ho * wo
    cp = _round_up(c_in, 8)      # pad channel rows so every K block is a whole number of sublane tiles
    cip = _round_up(c_inner, 8)

    # host prep 1: parity-split x -> (py, px, ci, n*ho*wo), channel rows zero-padded to cp.
    xp = x_nchw.reshape(n, c_in, ho, 2, wo, 2)
    xp = jnp.transpose(xp, (3, 5, 1, 0, 2, 4)).reshape(2, 2, c_in, m)
    xpar = jnp.zeros((2, 2, cp, m), jnp.float32).at[:, :, :c_in, :].set(xp)

    # host prep 2: precompute the 9 boundary masks, one (dy,dx) row each (perf review item 1).
    lane = jnp.arange(m)
    a = (lane // wo) % ho
    b = lane % wo
    mask = jnp.stack(
        [((a + dy >= 0) & (a + dy < ho) & (b + dx >= 0) & (b + dx < wo))
         for dy, dx in _SHIFTS], axis=0).astype(jnp.float32)          # (9, M)

    # host prep 3: pack conv weights into the two GEMM operands (tiny; folded by XLA),
    # pre-cast to bf16 so the kernel does no weight cast.
    wd_big = jnp.zeros((cip, 16 * cp), jnp.float32)
    blk = 0
    for py in (0, 1):
        for px in (0, 1):
            for _dy, kh in _DOWN_TAPS[py]:
                for _dx, kw in _DOWN_TAPS[px]:
                    wd_big = wd_big.at[:c_inner, blk * cp:blk * cp + c_in].set(
                        w_down[:, :, kh, kw])
                    blk += 1
    wd_big = wd_big.astype(_MXU_DTYPE)

    wu_big = jnp.zeros((4 * c_out, 9 * cip), jnp.float32)
    for p, (py, px) in enumerate(_PARITIES):
        for dy, ky in _UP_TAPS[py]:
            for dx, kx in _UP_TAPS[px]:
                s = _SHIFTS.index((dy, dx))
                wu_big = wu_big.at[p::4, s * cip:s * cip + c_inner].set(
                    w_up[:, :, ky, kx].T)
    wu_big = wu_big.astype(_MXU_DTYPE)

    # host prep 4: BatchNorm helpers — group-indicator matrix and pre-repeated gamma/beta.
    ridx = jnp.arange(4 * c_out)
    avg = (ridx[:, None] // 4 == ridx[None, :] // 4).astype(jnp.float32)    # (4*C_out, 4*C_out)
    gamma_rep = jnp.repeat(gamma.astype(jnp.float32), 4)[:, None]           # (4*C_out, 1)
    beta_rep = jnp.repeat(beta.astype(jnp.float32), 4)[:, None]             # (4*C_out, 1)

    # the single fused kernel
    # TODO(synk): for production M, add a "parallel" grid over the lane axis (v7x: 2 TCs,
    # halve the tile for 64 MiB VMEM) with a two-pass BatchNorm reduction.
    kernel = functools.partial(_fused_block_kernel, wo=wo)
    y_par = pl.pallas_call(
        kernel,
        out_shape=jax.ShapeDtypeStruct((4 * c_out, m), jnp.float32),
        in_specs=[
            pl.BlockSpec(memory_space=pltpu.MemorySpace.VMEM),   # parity-split x
            pl.BlockSpec(memory_space=pltpu.MemorySpace.VMEM),   # down GEMM weights (bf16)
            pl.BlockSpec(memory_space=pltpu.MemorySpace.VMEM),   # up GEMM weights (bf16)
            pl.BlockSpec(memory_space=pltpu.MemorySpace.VMEM),   # boundary masks (9, M)
            pl.BlockSpec(memory_space=pltpu.MemorySpace.VMEM),   # BN group-indicator matrix
            pl.BlockSpec(memory_space=pltpu.MemorySpace.VMEM),   # gamma, repeated (4*C_out, 1)
            pl.BlockSpec(memory_space=pltpu.MemorySpace.VMEM),   # beta,  repeated (4*C_out, 1)
        ],
        out_specs=pl.BlockSpec(memory_space=pltpu.MemorySpace.VMEM),
    )(xpar, wd_big, wu_big, mask, avg, gamma_rep, beta_rep)

    # host post: depth-to-space (interleave the 4 parities) + skip concat.
    # TODO(synk): at production sizes, alias into a pre-allocated concat buffer to save an HBM pass.
    y = y_par.reshape(c_out, 2, 2, n, ho, wo)                 # (co, py, px, n, a, b)
    y = jnp.transpose(y, (3, 0, 4, 1, 5, 2)).reshape(n, c_out, h, w)
    return jnp.concatenate([x_nchw, y], axis=1)


# ---------------- pure-JAX reference for validation ----------------

def block_innermost_reference(x, params):
    xr = jnp.where(x >= 0, x, 0.2 * x)
    h = jax.lax.conv_general_dilated(
        xr, params["w_down"], (2, 2), ((1, 1), (1, 1)),
        dimension_numbers=("NCHW", "OIHW", "NCHW"))
    h = jnp.maximum(h, 0.0)
    w_up_oihw = jnp.transpose(params["w_up"][:, :, ::-1, ::-1], (1, 0, 2, 3))
    y = jax.lax.conv_general_dilated(
        h, w_up_oihw, (1, 1), ((2, 2), (2, 2)), lhs_dilation=(2, 2),
        dimension_numbers=("NCHW", "OIHW", "NCHW"))
    mean = jnp.mean(y, axis=(0, 2, 3), keepdims=True)
    var = jnp.mean((y - mean) ** 2, axis=(0, 2, 3), keepdims=True)
    yn = (y - mean) * jax.lax.rsqrt(var + _BN_EPS)
    yn = yn * params["gamma"].reshape(1, -1, 1, 1) + params["beta"].reshape(1, -1, 1, 1)
    return jnp.concatenate([x, yn], axis=1)


if __name__ == "__main__":
    # Block(outer_channel=4, inner_channel=8, innermost=True) -> num_channels = 4
    outer_channel, inner_channel, num_channels = 4, 8, 4
    n, h, w = 2, 16, 16

    key = jax.random.PRNGKey(0)
    k_x, k_wd, k_wu = jax.random.split(key, 3)

    x = jax.random.normal(k_x, (n, num_channels, h, w), dtype=jnp.float32)
    params = {
        # Conv2d(num_channels, inner_channel, 4, 2, 1, bias=False): weight (out, in, kh, kw)
        "w_down": 0.1 * jax.random.normal(k_wd, (inner_channel, num_channels, 4, 4), jnp.float32),
        # ConvTranspose2d(inner_channel, outer_channel, 4, 2, 1, bias=False): weight (in, out, kh, kw)
        "w_up": 0.1 * jax.random.normal(k_wu, (inner_channel, outer_channel, 4, 4), jnp.float32),
        # BatchNorm2d(outer_channel) default affine init
        "gamma": jnp.ones((outer_channel,), jnp.float32),
        "beta": jnp.zeros((outer_channel,), jnp.float32),
    }

    out = jax.block_until_ready(block_innermost_forward(x, params))
    ref = jax.block_until_ready(block_innermost_reference(x, params))

    assert out.shape == (n, num_channels + outer_channel, h, w), out.shape
    # bf16 MXU inputs (f32 accumulation) -> loosened tolerance vs. the f32 reference.
    assert jnp.allclose(out, ref, atol=5e-2, rtol=5e-2), float(jnp.max(jnp.abs(out - ref)))
    print("KERNEL_OK")
</pallas_src>

<mosaic_0001>
module attributes {stable_mosaic.version = 11 : i64} {
  func.func @_fused_block_kernel(%arg0: memref<2x2x8x128xf32, #tpu.memory_space<vmem>>, %arg1: memref<8x128xbf16, #tpu.memory_space<vmem>>, %arg2: memref<16x72xbf16, #tpu.memory_space<vmem>>, %arg3: memref<9x128xf32, #tpu.memory_space<vmem>>, %arg4: memref<16x16xf32, #tpu.memory_space<vmem>>, %arg5: memref<16x1xf32, #tpu.memory_space<vmem>>, %arg6: memref<16x1xf32, #tpu.memory_space<vmem>>, %arg7: memref<16x128xf32, #tpu.memory_space<vmem>>) attributes {dimension_semantics = [], scalar_prefetch = 0 : i64, scratch_operands = 0 : i64, tpu.core_type = #tpu.core_type<tc>} {
    %c0 = arith.constant 0 : index
    %c0_0 = arith.constant 0 : index
    %0 = vector.load %arg3[%c0, %c0_0] : memref<9x128xf32, #tpu.memory_space<vmem>>, vector<1x128xf32>
    %c1 = arith.constant 1 : index
    %c0_1 = arith.constant 0 : index
    %1 = vector.load %arg3[%c1, %c0_1] : memref<9x128xf32, #tpu.memory_space<vmem>>, vector<1x128xf32>
    %c2 = arith.constant 2 : index
    %c0_2 = arith.constant 0 : index
    %2 = vector.load %arg3[%c2, %c0_2] : memref<9x128xf32, #tpu.memory_space<vmem>>, vector<1x128xf32>
    %c3 = arith.constant 3 : index
    %c0_3 = arith.constant 0 : index
    %3 = vector.load %arg3[%c3, %c0_3] : memref<9x128xf32, #tpu.memory_space<vmem>>, vector<1x128xf32>
    %c5 = arith.constant 5 : index
    %c0_4 = arith.constant 0 : index
    %4 = vector.load %arg3[%c5, %c0_4] : memref<9x128xf32, #tpu.memory_space<vmem>>, vector<1x128xf32>
    %c6 = arith.constant 6 : index
    %c0_5 = arith.constant 0 : index
    %5 = vector.load %arg3[%c6, %c0_5] : memref<9x128xf32, #tpu.memory_space<vmem>>, vector<1x128xf32>
    %c7 = arith.constant 7 : index
    %c0_6 = arith.constant 0 : index
    %6 = vector.load %arg3[%c7, %c0_6] : memref<9x128xf32, #tpu.memory_space<vmem>>, vector<1x128xf32>
    %c8 = arith.constant 8 : index
    %c0_7 = arith.constant 0 : index
    %7 = vector.load %arg3[%c8, %c0_7] : memref<9x128xf32, #tpu.memory_space<vmem>>, vector<1x128xf32>
    %c0_8 = arith.constant 0 : index
    %c0_9 = arith.constant 0 : index
    %c0_10 = arith.constant 0 : index
    %c0_11 = arith.constant 0 : index
    %8 = vector.load %arg0[%c0_8, %c0_9, %c0_10, %c0_11] : memref<2x2x8x128xf32, #tpu.memory_space<vmem>>, vector<2x2x8x128xf32>
    %cst = arith.constant 0.000000e+00 : f32
    %9 = vector.broadcast %cst : f32 to vector<2x2x8x128xf32>
    %10 = arith.cmpf oge, %8, %9 : vector<2x2x8x128xf32>
    %cst_12 = arith.constant 2.000000e-01 : f32
    %11 = vector.broadcast %cst_12 : f32 to vector<2x2x8x128xf32>
    %12 = arith.mulf %11, %8 : vector<2x2x8x128xf32>
    %13 = arith.select %10, %8, %12 : vector<2x2x8x128xi1>, vector<2x2x8x128xf32>
    %14 = vector.extract_strided_slice %13 {offsets = [0, 0, 0, 0], sizes = [1, 1, 8, 128], strides = [1, 1, 1, 1]} : vector<2x2x8x128xf32> to vector<1x1x8x128xf32>
    %15 = vector.shape_cast %14 : vector<1x1x8x128xf32> to vector<8x128xf32>
    %c127_i32 = arith.constant 127 : i32
    %16 = tpu.dynamic_rotate %15 by %c127_i32 dim 1 : vector<8x128xf32>, i32 -> vector<8x128xf32>
    %17 = vector.broadcast %4 : vector<1x128xf32> to vector<8x128xf32>
    %18 = arith.mulf %16, %17 : vector<8x128xf32>
    %c120_i32 = arith.constant 120 : i32
    %19 = tpu.dynamic_rotate %15 by %c120_i32 dim 1 : vector<8x128xf32>, i32 -> vector<8x128xf32>
    %20 = vector.broadcast %6 : vector<1x128xf32> to vector<8x128xf32>
    %21 = arith.mulf %19, %20 : vector<8x128xf32>
    %c119_i32 = arith.constant 119 : i32
    %22 = tpu.dynamic_rotate %15 by %c119_i32 dim 1 : vector<8x128xf32>, i32 -> vector<8x128xf32>
    %23 = vector.broadcast %7 : vector<1x128xf32> to vector<8x128xf32>
    %24 = arith.mulf %22, %23 : vector<8x128xf32>
    %25 = vector.extract_strided_slice %13 {offsets = [0, 1, 0, 0], sizes = [1, 1, 8, 128], strides = [1, 1, 1, 1]} : vector<2x2x8x128xf32> to vector<1x1x8x128xf32>
    %26 = vector.shape_cast %25 : vector<1x1x8x128xf32> to vector<8x128xf32>
    %c1_i32 = arith.constant 1 : i32
    %27 = tpu.dynamic_rotate %26 by %c1_i32 dim 1 : vector<8x128xf32>, i32 -> vector<8x128xf32>
    %28 = vector.broadcast %3 : vector<1x128xf32> to vector<8x128xf32>
    %29 = arith.mulf %27, %28 : vector<8x128xf32>
    %c121_i32 = arith.constant 121 : i32
    %30 = tpu.dynamic_rotate %26 by %c121_i32 dim 1 : vector<8x128xf32>, i32 -> vector<8x128xf32>
    %31 = vector.broadcast %5 : vector<1x128xf32> to vector<8x128xf32>
    %32 = arith.mulf %30, %31 : vector<8x128xf32>
    %c120_i32_13 = arith.constant 120 : i32
    %33 = tpu.dynamic_rotate %26 by %c120_i32_13 dim 1 : vector<8x128xf32>, i32 -> vector<8x128xf32>
    %34 = vector.broadcast %6 : vector<1x128xf32> to vector<8x128xf32>
    %35 = arith.mulf %33, %34 : vector<8x128xf32>
    %36 = vector.extract_strided_slice %13 {offsets = [1, 0, 0, 0], sizes = [1, 1, 8, 128], strides = [1, 1, 1, 1]} : vector<2x2x8x128xf32> to vector<1x1x8x128xf32>
    %37 = vector.shape_cast %36 : vector<1x1x8x128xf32> to vector<8x128xf32>
    %c8_i32 = arith.constant 8 : i32
    %38 = tpu.dynamic_rotate %37 by %c8_i32 dim 1 : vector<8x128xf32>, i32 -> vector<8x128xf32>
    %39 = vector.broadcast %1 : vector<1x128xf32> to vector<8x128xf32>
    %40 = arith.mulf %38, %39 : vector<8x128xf32>
    %c7_i32 = arith.constant 7 : i32
    %41 = tpu.dynamic_rotate %37 by %c7_i32 dim 1 : vector<8x128xf32>, i32 -> vector<8x128xf32>
    %42 = vector.broadcast %2 : vector<1x128xf32> to vector<8x128xf32>
    %43 = arith.mulf %41, %42 : vector<8x128xf32>
    %c127_i32_14 = arith.constant 127 : i32
    %44 = tpu.dynamic_rotate %37 by %c127_i32_14 dim 1 : vector<8x128xf32>, i32 -> vector<8x128xf32>
    %45 = vector.broadcast %4 : vector<1x128xf32> to vector<8x128xf32>
    %46 = arith.mulf %44, %45 : vector<8x128xf32>
    %47 = vector.extract_strided_slice %13 {offsets = [1, 1, 0, 0], sizes = [1, 1, 8, 128], strides = [1, 1, 1, 1]} : vector<2x2x8x128xf32> to vector<1x1x8x128xf32>
    %48 = vector.shape_cast %47 : vector<1x1x8x128xf32> to vector<8x128xf32>
    %c9_i32 = arith.constant 9 : i32
    %49 = tpu.dynamic_rotate %48 by %c9_i32 dim 1 : vector<8x128xf32>, i32 -> vector<8x128xf32>
    %50 = vector.broadcast %0 : vector<1x128xf32> to vector<8x128xf32>
    %51 = arith.mulf %49, %50 : vector<8x128xf32>
    %c8_i32_15 = arith.constant 8 : i32
    %52 = tpu.dynamic_rotate %48 by %c8_i32_15 dim 1 : vector<8x128xf32>, i32 -> vector<8x128xf32>
    %53 = vector.broadcast %1 : vector<1x128xf32> to vector<8x128xf32>
    %54 = arith.mulf %52, %53 : vector<8x128xf32>
    %c1_i32_16 = arith.constant 1 : i32
    %55 = tpu.dynamic_rotate %48 by %c1_i32_16 dim 1 : vector<8x128xf32>, i32 -> vector<8x128xf32>
    %56 = vector.broadcast %3 : vector<1x128xf32> to vector<8x128xf32>
    %57 = arith.mulf %55, %56 : vector<8x128xf32>
    %58 = tpu.concatenate %15, %18, %21, %24, %29, %26, %32, %35, %40, %43, %37, %46, %51, %54, %57, %48 in 0 : vector<8x128xf32>, vector<8x128xf32>, vector<8x128xf32>, vector<8x128xf32>, vector<8x128xf32>, vector<8x128xf32>, vector<8x128xf32>, vector<8x128xf32>, vector<8x128xf32>, vector<8x128xf32>, vector<8x128xf32>, vector<8x128xf32>, vector<8x128xf32>, vector<8x128xf32>, vector<8x128xf32>, vector<8x128xf32> -> vector<128x128xf32>
    %c0_17 = arith.constant 0 : index
    %c0_18 = arith.constant 0 : index
    %59 = vector.load %arg1[%c0_17, %c0_18] : memref<8x128xbf16, #tpu.memory_space<vmem>>, vector<8x128xbf16>
    %60 = arith.truncf %58 : vector<128x128xf32> to vector<128x128xbf16>
    %cst_19 = arith.constant dense<0.000000e+00> : vector<8x128xf32>
    %61 = tpu.matmul %59, %60, %cst_19 {dimension_numbers = #tpu.dot_dimension_numbers<[1], [0], [0], [1], [0, 0, 1, 1], [], []>} : vector<8x128xbf16>, vector<128x128xbf16>, vector<8x128xf32> -> vector<8x128xf32>
    %cst_20 = arith.constant 0.000000e+00 : f32
    %62 = vector.broadcast %cst_20 : f32 to vector<8x128xf32>
    %63 = arith.maximumf %61, %62 : vector<8x128xf32>
    %c9_i32_21 = arith.constant 9 : i32
    %64 = tpu.dynamic_rotate %63 by %c9_i32_21 dim 1 : vector<8x128xf32>, i32 -> vector<8x128xf32>
    %65 = vector.broadcast %0 : vector<1x128xf32> to vector<8x128xf32>
    %66 = arith.mulf %64, %65 : vector<8x128xf32>
    %c8_i32_22 = arith.constant 8 : i32
    %67 = tpu.dynamic_rotate %63 by %c8_i32_22 dim 1 : vector<8x128xf32>, i32 -> vector<8x128xf32>
    %68 = vector.broadcast %1 : vector<1x128xf32> to vector<8x128xf32>
    %69 = arith.mulf %67, %68 : vector<8x128xf32>
    %c7_i32_23 = arith.constant 7 : i32
    %70 = tpu.dynamic_rotate %63 by %c7_i32_23 dim 1 : vector<8x128xf32>, i32 -> vector<8x128xf32>
    %71 = vector.broadcast %2 : vector<1x128xf32> to vector<8x128xf32>
    %72 = arith.mulf %70, %71 : vector<8x128xf32>
    %c1_i32_24 = arith.constant 1 : i32
    %73 = tpu.dynamic_rotate %63 by %c1_i32_24 dim 1 : vector<8x128xf32>, i32 -> vector<8x128xf32>
    %74 = vector.broadcast %3 : vector<1x128xf32> to vector<8x128xf32>
    %75 = arith.mulf %73, %74 : vector<8x128xf32>
    %c127_i32_25 = arith.constant 127 : i32
    %76 = tpu.dynamic_rotate %63 by %c127_i32_25 dim 1 : vector<8x128xf32>, i32 -> vector<8x128xf32>
    %77 = vector.broadcast %4 : vector<1x128xf32> to vector<8x128xf32>
    %78 = arith.mulf %76, %77 : vector<8x128xf32>
    %c121_i32_26 = arith.constant 121 : i32
    %79 = tpu.dynamic_rotate %63 by %c121_i32_26 dim 1 : vector<8x128xf32>, i32 -> vector<8x128xf32>
    %80 = vector.broadcast %5 : vector<1x128xf32> to vector<8x128xf32>
    %81 = arith.mulf %79, %80 : vector<8x128xf32>
    %c120_i32_27 = arith.constant 120 : i32
    %82 = tpu.dynamic_rotate %63 by %c120_i32_27 dim 1 : vector<8x128xf32>, i32 -> vector<8x128xf32>
    %83 = vector.broadcast %6 : vector<1x128xf32> to vector<8x128xf32>
    %84 = arith.mulf %82, %83 : vector<8x128xf32>
    %c119_i32_28 = arith.constant 119 : i32
    %85 = tpu.dynamic_rotate %63 by %c119_i32_28 dim 1 : vector<8x128xf32>, i32 -> vector<8x128xf32>
    %86 = vector.broadcast %7 : vector<1x128xf32> to vector<8x128xf32>
    %87 = arith.mulf %85, %86 : vector<8x128xf32>
    %88 = tpu.concatenate %66, %69, %72, %75, %63, %78, %81, %84, %87 in 0 : vector<8x128xf32>, vector<8x128xf32>, vector<8x128xf32>, vector<8x128xf32>, vector<8x128xf32>, vector<8x128xf32>, vector<8x128xf32>, vector<8x128xf32>, vector<8x128xf32> -> vector<72x128xf32>
    %c0_29 = arith.constant 0 : index
    %c0_30 = arith.constant 0 : index
    %89 = vector.load %arg2[%c0_29, %c0_30] : memref<16x72xbf16, #tpu.memory_space<vmem>>, vector<16x72xbf16>
    %90 = arith.truncf %88 : vector<72x128xf32> to vector<72x128xbf16>
    %cst_31 = arith.constant dense<0.000000e+00> : vector<16x128xf32>
    %91 = tpu.matmul %89, %90, %cst_31 {dimension_numbers = #tpu.dot_dimension_numbers<[1], [0], [0], [1], [0, 0, 1, 1], [], []>} : vector<16x72xbf16>, vector<72x128xbf16>, vector<16x128xf32> -> vector<16x128xf32>
    %c0_32 = arith.constant 0 : index
    %c0_33 = arith.constant 0 : index
    %92 = vector.load %arg4[%c0_32, %c0_33] : memref<16x16xf32, #tpu.memory_space<vmem>>, vector<16x16xf32>
    %cst_34 = arith.constant dense<0.000000e+00> : vector<16x128xf32>
    %93 = tpu.matmul %92, %91, %cst_34 {dimension_numbers = #tpu.dot_dimension_numbers<[1], [0], [0], [1], [0, 0, 1, 1], [], []>} : vector<16x16xf32>, vector<16x128xf32>, vector<16x128xf32> -> vector<16x128xf32>
    %cst_35 = arith.constant dense<0.000000e+00> : vector<16xf32>
    %94 = vector.multi_reduction <add>, %93, %cst_35 [1] : vector<16x128xf32> to vector<16xf32>
    %95 = vector.shape_cast %94 : vector<16xf32> to vector<16x1xf32>
    %cst_36 = arith.constant 0.001953125 : f32
    %96 = vector.broadcast %cst_36 : f32 to vector<16x1xf32>
    %97 = arith.mulf %95, %96 : vector<16x1xf32>
    %98 = vector.broadcast %97 : vector<16x1xf32> to vector<16x128xf32>
    %99 = arith.subf %91, %98 : vector<16x128xf32>
    %c0_37 = arith.constant 0 : index
    %c0_38 = arith.constant 0 : index
    %100 = vector.load %arg4[%c0_37, %c0_38] : memref<16x16xf32, #tpu.memory_space<vmem>>, vector<16x16xf32>
    %101 = arith.mulf %99, %99 : vector<16x128xf32>
    %cst_39 = arith.constant dense<0.000000e+00> : vector<16x128xf32>
    %102 = tpu.matmul %100, %101, %cst_39 {dimension_numbers = #tpu.dot_dimension_numbers<[1], [0], [0], [1], [0, 0, 1, 1], [], []>} : vector<16x16xf32>, vector<16x128xf32>, vector<16x128xf32> -> vector<16x128xf32>
    %cst_40 = arith.constant dense<0.000000e+00> : vector<16xf32>
    %103 = vector.multi_reduction <add>, %102, %cst_40 [1] : vector<16x128xf32> to vector<16xf32>
    %104 = vector.shape_cast %103 : vector<16xf32> to vector<16x1xf32>
    %cst_41 = arith.constant 0.001953125 : f32
    %105 = vector.broadcast %cst_41 : f32 to vector<16x1xf32>
    %106 = arith.mulf %104, %105 : vector<16x1xf32>
    %cst_42 = arith.constant 9.99999974E-6 : f32
    %107 = vector.broadcast %cst_42 : f32 to vector<16x1xf32>
    %108 = arith.addf %106, %107 : vector<16x1xf32>
    %109 = math.rsqrt %108 : vector<16x1xf32>
    %110 = vector.broadcast %109 : vector<16x1xf32> to vector<16x128xf32>
    %111 = arith.mulf %99, %110 : vector<16x128xf32>
    %c0_43 = arith.constant 0 : index
    %c0_44 = arith.constant 0 : index
    %112 = vector.load %arg5[%c0_43, %c0_44] : memref<16x1xf32, #tpu.memory_space<vmem>>, vector<16x1xf32>
    %113 = vector.broadcast %112 : vector<16x1xf32> to vector<16x128xf32>
    %114 = arith.mulf %111, %113 : vector<16x128xf32>
    %c0_45 = arith.constant 0 : index
    %c0_46 = arith.constant 0 : index
    %115 = vector.load %arg6[%c0_45, %c0_46] : memref<16x1xf32, #tpu.memory_space<vmem>>, vector<16x1xf32>
    %116 = vector.broadcast %115 : vector<16x1xf32> to vector<16x128xf32>
    %117 = arith.addf %114, %116 : vector<16x128xf32>
    %c0_47 = arith.constant 0 : index
    %c0_48 = arith.constant 0 : index
    %118 = vector.load %arg7[%c0_47, %c0_48] : memref<16x128xf32, #tpu.memory_space<vmem>>, vector<16x128xf32>
    tpu.vector_store %arg7[%c0_47, %c0_48], %117 {strides = array<i32>} : memref<16x128xf32, #tpu.memory_space<vmem>>, vector<16x128xf32>,
    return
  }
}

</mosaic_0001>

<llo_original>
// kernel: block_innermost_forward.1
$region0: #{block_innermost_forward.1}
  #allocation0 [shape = 'u32[]', space=smem, size = 0x4, offset = 0x4, fixed_abs, tag = 'smem constant byte address 0x4 - core index']
  #allocation1 [shape = 'u32[144,128]{1,0:T(1,128)}', space=vmem, size = 0x12000, scoped, tag = 'internal scratch']
  %s0 = inlined_call_operand.vmem [shape: f32[2,2,8,128], index: 0, kind: input, shape index: {}]
  %s1 = inlined_call_operand.vmem [shape: bf16[8,128], index: 1, kind: input, shape index: {}]
  %s2 = inlined_call_operand.vmem [shape: bf16[16,72], index: 2, kind: input, shape index: {}]
  %s3 = inlined_call_operand.vmem [shape: f32[9,128], index: 3, kind: input, shape index: {}]
  %s4 = inlined_call_operand.vmem [shape: f32[16,16], index: 4, kind: input, shape index: {}]
  %s5 = inlined_call_operand.vmem [shape: f32[16,1], index: 5, kind: input, shape index: {}]
  %s6 = inlined_call_operand.vmem [shape: f32[16,1], index: 6, kind: input, shape index: {}]
  %s7 = inlined_call_operand.vmem [shape: f32[16,128], index: 7, kind: output, shape index: {}]
  %s8 = sld [smem:[#allocation0]]
  $region38: #{block_innermost_forward.1} parent=0
    _
  %s10 = ssub.s32 1, %s8
  %s11 = scalar_select 0, %s10, %s8
  // Predicated region
  $region2: #{block_innermost_forward.1} parent=0 // pred_check
    _
  $region3: #{block_innermost_forward.1} parent=0 // pred_check_branch
    %13 = sbr.rel (0) target = $region5
  $region4: #{block_innermost_forward.1} parent=0 // pred_region
    _
  $region5: #{block_innermost_forward.1} parent=0 // pred_fallthru
    _
  // Predicated region
  $region6: #{block_innermost_forward.1} parent=0 // pred_check
    _
  $region7: #{block_innermost_forward.1} parent=0 // pred_check_branch
    %15 = sbr.rel (0) target = $region9
  $region8: #{block_innermost_forward.1} parent=0 // pred_region
    _
  $region9: #{block_innermost_forward.1} parent=0 // pred_fallthru
    _
  // Predicated region
  $region10: #{block_innermost_forward.1} parent=0 // pred_check
    _
  $region11: #{block_innermost_forward.1} parent=0 // pred_check_branch
    %17 = sbr.rel (0) target = $region13
  $region12: #{block_innermost_forward.1} parent=0 // pred_region
    _
  $region13: #{block_innermost_forward.1} parent=0 // pred_fallthru
    _
  // Predicated region
  $region14: #{block_innermost_forward.1} parent=0 // pred_check
    _
  $region15: #{block_innermost_forward.1} parent=0 // pred_check_branch
    %19 = sbr.rel (0) target = $region17
  $region16: #{block_innermost_forward.1} parent=0 // pred_region
    _
  $region17: #{block_innermost_forward.1} parent=0 // pred_fallthru
    _
  // Predicated region
  $region18: #{block_innermost_forward.1} parent=0 // pred_check
    _
  $region19: #{block_innermost_forward.1} parent=0 // pred_check_branch
    %21 = sbr.rel (0) target = $region21
  $region20: #{block_innermost_forward.1} parent=0 // pred_region
    _
  $region21: #{block_innermost_forward.1} parent=0 // pred_fallthru
    _
  // Predicated region
  $region22: #{block_innermost_forward.1} parent=0 // pred_check
    _
  $region23: #{block_innermost_forward.1} parent=0 // pred_check_branch
    %23 = sbr.rel (0) target = $region25
  $region24: #{block_innermost_forward.1} parent=0 // pred_region
    _
  $region25: #{block_innermost_forward.1} parent=0 // pred_fallthru
    _
  // Predicated region
  $region26: #{block_innermost_forward.1} parent=0 // pred_check
    _
  $region27: #{block_innermost_forward.1} parent=0 // pred_check_branch
    %25 = sbr.rel (0) target = $region29
  $region28: #{block_innermost_forward.1} parent=0 // pred_region
    _
  $region29: #{block_innermost_forward.1} parent=0 // pred_fallthru
    _
  %v27 = vld [vmem:[%s3] sm:$0x1]
  %v28 = vld [vmem:[%s3 + $0x1] sm:$0x1]
  %v29 = vld [vmem:[%s3 + $0x2] sm:$0x1]
  %v30 = vld [vmem:[%s3 + $0x3] sm:$0x1]
  %v31 = vld [vmem:[%s3 + $0x5] sm:$0x1]
  %v32 = vld [vmem:[%s3 + $0x6] sm:$0x1]
  %v33 = vld [vmem:[%s3 + $0x7] sm:$0x1]
  %v34 = vld [vmem:[%s3 + $0x8] sm:$0x1]
  %v35 = vld [vmem:[%s0] sm:$0xff]
  %v36 = vld [vmem:[%s0 + $0x8] sm:$0xff]
  %v37 = vld [vmem:[%s0 + $0x10] sm:$0xff]
  %v38 = vld [vmem:[%s0 + $0x18] sm:$0xff]
  %vm39 = vcmp.ge.f32.partialorder %v35, 0.0
  %vm40 = vcmp.ge.f32.partialorder %v36, 0.0
  %vm41 = vcmp.ge.f32.partialorder %v37, 0.0
  %vm42 = vcmp.ge.f32.partialorder %v38, 0.0
  %v43 = vmul.f32 %v35, 0.2
  %v44 = vmul.f32 %v36, 0.2
  %v45 = vmul.f32 %v37, 0.2
  %v46 = vmul.f32 %v38, 0.2
  %v47 = vsel %vm39, %v35, %v43
  %v48 = vsel %vm40, %v36, %v44
  %v49 = vsel %vm41, %v37, %v45
  %v50 = vsel %vm42, %v38, %v46
  %51 = vrot.lane.b32.xlu0 %v47, 127
  %v52 = vpop.permute.xlu0 %51
  %v53 = vlaneseq
  %v54 = vshrl.u32 %v53, 7
  %v55 = vsub.s32 0, %v54
  %v56 = vrot.slane %v31, %v55
  %v57 = vmul.f32 %v52, %v56
  %58 = vrot.lane.b32.xlu0 %v47, 120
  %v59 = vpop.permute.xlu0 %58
  %v60 = vlaneseq
  %v61 = vshrl.u32 %v60, 7
  %v62 = vsub.s32 0, %v61
  %v63 = vrot.slane %v33, %v62
  %v64 = vmul.f32 %v59, %v63
  %65 = vrot.lane.b32.xlu0 %v47, 119
  %v66 = vpop.permute.xlu0 %65
  %v67 = vlaneseq
  %v68 = vshrl.u32 %v67, 7
  %v69 = vsub.s32 0, %v68
  %v70 = vrot.slane %v34, %v69
  %v71 = vmul.f32 %v66, %v70
  %72 = vrot.lane.b32.xlu0 %v48, 1
  %v73 = vpop.permute.xlu0 %72
  %v74 = vlaneseq
  %v75 = vshrl.u32 %v74, 7
  %v76 = vsub.s32 0, %v75
  %v77 = vrot.slane %v30, %v76
  %v78 = vmul.f32 %v73, %v77
  %79 = vrot.lane.b32.xlu0 %v48, 121
  %v80 = vpop.permute.xlu0 %79
  %v81 = vlaneseq
  %v82 = vshrl.u32 %v81, 7
  %v83 = vsub.s32 0, %v82
  %v84 = vrot.slane %v32, %v83
  %v85 = vmul.f32 %v80, %v84
  %86 = vrot.lane.b32.xlu0 %v48, 120
  %v87 = vpop.permute.xlu0 %86
  %v88 = vmul.f32 %v87, %v63
  %89 = vrot.lane.b32.xlu0 %v49, 8
  %v90 = vpop.permute.xlu0 %89
  %v91 = vlaneseq
  %v92 = vshrl.u32 %v91, 7
  %v93 = vsub.s32 0, %v92
  %v94 = vrot.slane %v28, %v93
  %v95 = vmul.f32 %v90, %v94
  %96 = vrot.lane.b32.xlu0 %v49, 7
  %v97 = vpop.permute.xlu0 %96
  %v98 = vlaneseq
  %v99 = vshrl.u32 %v98, 7
  %v100 = vsub.s32 0, %v99
  %v101 = vrot.slane %v29, %v100
  %v102 = vmul.f32 %v97, %v101
  %103 = vrot.lane.b32.xlu0 %v49, 127
  %v104 = vpop.permute.xlu0 %103
  %v105 = vmul.f32 %v104, %v56
  %106 = vrot.lane.b32.xlu0 %v50, 9
  %v107 = vpop.permute.xlu0 %106
  %v108 = vlaneseq
  %v109 = vshrl.u32 %v108, 7
  %v110 = vsub.s32 0, %v109
  %v111 = vrot.slane %v27, %v110
  %v112 = vmul.f32 %v107, %v111
  %113 = vrot.lane.b32.xlu0 %v50, 8
  %v114 = vpop.permute.xlu0 %113
  %v115 = vmul.f32 %v114, %v94
  %116 = vrot.lane.b32.xlu0 %v50, 1
  %v117 = vpop.permute.xlu0 %116
  %v118 = vmul.f32 %v117, %v77
  %v119 = vld [vmem:[%s1] sm:$0xf]
  %v120 = vpack.c.bf16 %v57, %v47
  %v121 = vpack.c.bf16 %v71, %v64
  %v122 = vpack.c.bf16 %v48, %v78
  %v123 = vpack.c.bf16 %v88, %v85
  %v124 = vpack.c.bf16 %v102, %v95
  %v125 = vpack.c.bf16 %v105, %v49
  %v126 = vpack.c.bf16 %v115, %v112
  %v127 = vpack.c.bf16 %v50, %v118
  %128 = vmatprep.subr.bf16.mxu0 0
  %129 = vmatpush1.bf16.msra.mxu0 %v127
  %130 = vmatprep.subr.bf16.mxu0 0
  %131 = vmatpush1.bf16.msra.mxu0 %v126
  %132 = vmatprep.subr.bf16.mxu0 0
  %133 = vmatpush1.bf16.msra.mxu0 %v125
  %134 = vmatprep.subr.bf16.mxu0 0
  %135 = vmatpush1.bf16.msra.mxu0 %v124
  %136 = vmatprep.subr.bf16.mxu0 0
  %137 = vmatpush1.bf16.msra.mxu0 %v123
  %138 = vmatprep.subr.bf16.mxu0 0
  %139 = vmatpush1.bf16.msra.mxu0 %v122
  %140 = vmatprep.subr.bf16.mxu0 0
  %141 = vmatpush1.bf16.msra.mxu0 %v121
  %142 = vmatprep.subr.bf16.mxu0 0
  %143 = vmatpush1.bf16.msra.mxu0 %v120
  %144 = vmatprep.subr.bf16.mxu0 0
  %145 = vmatpush2.bf16.msra.mxu0 0
  %146 = vmatprep.subr.bf16.mxu0 0
  %147 = vmatpush2.bf16.msra.mxu0 0
  %148 = vmatprep.subr.bf16.mxu0 0
  %149 = vmatpush2.bf16.msra.mxu0 0
  %150 = vmatprep.subr.bf16.mxu0 0
  %151 = vmatpush2.bf16.msra.mxu0 0
  %152 = vmatprep.subr.bf16.mxu0 0
  %153 = vmatpush2.bf16.msra.mxu0 0
  %154 = vmatprep.subr.bf16.mxu0 0
  %155 = vmatpush2.bf16.msra.mxu0 0
  %156 = vmatprep.subr.bf16.mxu0 0
  %157 = vmatpush2.bf16.msra.mxu0 0
  %158 = vmatprep.subr.bf16.mxu0 0
  %159 = vmatpush2.bf16.msra.mxu0 0
  %160 = vmatprep.mubr.bf16.mxu0 0
  %161 = vmatmul.mubr.bf16.gmra.mxu0 %v119
  %v162 = vpop.f32.mrf.mxu0
  %v163 = vadd.f32 0.0, %v162
  %v164 = vpop.f32.mrf.mxu0
  %v165 = vpop.f32.mrf.mxu0
  %v166 = vpop.f32.mrf.mxu0
  %167 = vdwg.mxu0
  %v168 = vmax.f32 %v163, 0.0
  %169 = vrot.lane.b32.xlu0 %v168, 9
  %v170 = vpop.permute.xlu0 %169
  %v171 = vmul.f32 %v170, %v111
  %172 = vrot.lane.b32.xlu0 %v168, 8
  %v173 = vpop.permute.xlu0 %172
  %v174 = vmul.f32 %v173, %v94
  %175 = vrot.lane.b32.xlu0 %v168, 7
  %v176 = vpop.permute.xlu0 %175
  %v177 = vmul.f32 %v176, %v101
  %178 = vrot.lane.b32.xlu0 %v168, 1
  %v179 = vpop.permute.xlu0 %178
  %v180 = vmul.f32 %v179, %v77
  %181 = vrot.lane.b32.xlu0 %v168, 127
  %v182 = vpop.permute.xlu0 %181
  %v183 = vmul.f32 %v182, %v56
  %184 = vrot.lane.b32.xlu0 %v168, 121
  %v185 = vpop.permute.xlu0 %184
  %v186 = vmul.f32 %v185, %v84
  %187 = vrot.lane.b32.xlu0 %v168, 120
  %v188 = vpop.permute.xlu0 %187
  %v189 = vmul.f32 %v188, %v63
  %190 = vrot.lane.b32.xlu0 %v168, 119
  %v191 = vpop.permute.xlu0 %190
  %v192 = vmul.f32 %v191, %v70
  %v193 = vld [vmem:[%s2] sm:$0xf]
  %v194 = vld [vmem:[%s2 + $0x4] sm:$0xf]
  %v195 = vpack.c.bf16 %v174, %v171
  %v196 = vpack.c.bf16 %v180, %v177
  %v197 = vpack.c.bf16 %v183, %v168
  %v198 = vpack.c.bf16 %v189, %v186
  %v199 = vpack.c.bf16 %v192, %v192
  %v202 = vunpack.c.l.b16 %v193
  %v203 = vunpack.c.l.b16 %v194
  %v204 = vpack.c.b16 %v203, %v202
  %vm205 = vcmask 588800
  %v207 = vsel %vm205, %v204, 0
  %vm209 = vcmask 1043456
  %v211 = vsel %vm209, %v199, 0
  %213 = vmatprep.subr.bf16.mxu0 0
  %214 = vmatpush1.bf16.msra.mxu0 0
  %215 = vmatprep.subr.bf16.mxu0 0
  %216 = vmatpush1.bf16.msra.mxu0 0
  %217 = vmatprep.subr.bf16.mxu0 0
  %218 = vmatpush1.bf16.msra.mxu0 0
  %219 = vmatprep.subr.bf16.mxu0 0
  %220 = vmatpush1.bf16.msra.mxu0 %v211
  %221 = vmatprep.subr.bf16.mxu0 0
  %222 = vmatpush1.bf16.msra.mxu0 %v198
  %223 = vmatprep.subr.bf16.mxu0 0
  %224 = vmatpush1.bf16.msra.mxu0 %v197
  %225 = vmatprep.subr.bf16.mxu0 0
  %226 = vmatpush1.bf16.msra.mxu0 %v196
  %227 = vmatprep.subr.bf16.mxu0 0
  %228 = vmatpush1.bf16.msra.mxu0 %v195
  %229 = vmatprep.subr.bf16.mxu0 0
  %230 = vmatpush2.bf16.msra.mxu0 0
  %231 = vmatprep.subr.bf16.mxu0 0
  %232 = vmatpush2.bf16.msra.mxu0 0
  %233 = vmatprep.subr.bf16.mxu0 0
  %234 = vmatpush2.bf16.msra.mxu0 0
  %235 = vmatprep.subr.bf16.mxu0 0
  %236 = vmatpush2.bf16.msra.mxu0 0
  %237 = vmatprep.subr.bf16.mxu0 0
  %238 = vmatpush2.bf16.msra.mxu0 0
  %239 = vmatprep.subr.bf16.mxu0 0
  %240 = vmatpush2.bf16.msra.mxu0 0
  %241 = vmatprep.subr.bf16.mxu0 0
  %242 = vmatpush2.bf16.msra.mxu0 0
  %243 = vmatprep.subr.bf16.mxu0 0
  %244 = vmatpush2.bf16.msra.mxu0 0
  %245 = vmatprep.mubr.bf16.mxu0 0
  %246 = vmatmul.mubr.bf16.gmra.mxu0 %v207
  %v247 = vpop.f32.mrf.mxu0
  %v248 = vadd.f32 0.0, %v247
  %v249 = vpop.f32.mrf.mxu0
  %v250 = vpop.f32.mrf.mxu0
  %v251 = vadd.f32 0.0, %v250
  %v252 = vpop.f32.mrf.mxu0
  %253 = vdwg.mxu0
  %v254 = vld [vmem:[%s4] sm:$0xff]
  %v255 = vld [vmem:[%s4 + $0x8] sm:$0xff]
  %vm256 = vcmask 130048
  %v258 = vsel %vm256, %v254, 0
  %v261 = vsel %vm256, %v255, 0
  %263 = vmatprep.subr.mxu0 0.0
  %264 = vmatpush1.msra.mxu0 0.0
  %265 = vmatprep.subr.mxu0 0.0
  %266 = vmatpush1.msra.mxu0 0.0
  %267 = vmatprep.subr.mxu0 0.0
  %268 = vmatpush1.msra.mxu0 0.0
  %269 = vmatprep.subr.mxu0 0.0
  %270 = vmatpush1.msra.mxu0 0.0
  %271 = vmatprep.subr.mxu0 0.0
  %272 = vmatpush1.msra.mxu0 0.0
  %273 = vmatprep.subr.mxu0 0.0
  %274 = vmatpush1.msra.mxu0 0.0
  %275 = vmatprep.subr.mxu0 0.0
  %276 = vmatpush1.msra.mxu0 0.0
  %277 = vmatprep.subr.mxu0 0.0
  %278 = vmatpush1.msra.mxu0 0.0
  %279 = vmatprep.subr.mxu0 0.0
  %280 = vmatpush1.msra.mxu0 0.0
  %281 = vmatprep.subr.mxu0 0.0
  %282 = vmatpush1.msra.mxu0 0.0
  %283 = vmatprep.subr.mxu0 0.0
  %284 = vmatpush1.msra.mxu0 0.0
  %285 = vmatprep.subr.mxu0 0.0
  %286 = vmatpush1.msra.mxu0 0.0
  %287 = vmatprep.subr.mxu0 0.0
  %288 = vmatpush1.msra.mxu0 0.0
  %289 = vmatprep.subr.mxu0 0.0
  %290 = vmatpush1.msra.mxu0 0.0
  %291 = vmatprep.subr.mxu0 0.0
  %292 = vmatpush1.msra.mxu0 %v251
  %293 = vmatprep.subr.mxu0 0.0
  %294 = vmatpush1.msra.mxu0 %v248
  %295 = vmatprep.subr.mxu0 0.0
  %296 = vmatpush2.msra.mxu0 0.0
  %297 = vmatprep.subr.mxu0 0.0
  %298 = vmatpush2.msra.mxu0 0.0
  %299 = vmatprep.subr.mxu0 0.0
  %300 = vmatpush2.msra.mxu0 0.0
  %301 = vmatprep.subr.mxu0 0.0
  %302 = vmatpush2.msra.mxu0 0.0
  %303 = vmatprep.subr.mxu0 0.0
  %304 = vmatpush2.msra.mxu0 0.0
  %305 = vmatprep.subr.mxu0 0.0
  %306 = vmatpush2.msra.mxu0 0.0
  %307 = vmatprep.subr.mxu0 0.0
  %308 = vmatpush2.msra.mxu0 0.0
  %309 = vmatprep.subr.mxu0 0.0
  %310 = vmatpush2.msra.mxu0 0.0
  %311 = vmatprep.subr.mxu0 0.0
  %312 = vmatpush2.msra.mxu0 0.0
  %313 = vmatprep.subr.mxu0 0.0
  %314 = vmatpush2.msra.mxu0 0.0
  %315 = vmatprep.subr.mxu0 0.0
  %316 = vmatpush2.msra.mxu0 0.0
  %317 = vmatprep.subr.mxu0 0.0
  %318 = vmatpush2.msra.mxu0 0.0
  %319 = vmatprep.subr.mxu0 0.0
  %320 = vmatpush2.msra.mxu0 0.0
  %321 = vmatprep.subr.mxu0 0.0
  %322 = vmatpush2.msra.mxu0 0.0
  %323 = vmatprep.subr.mxu0 0.0
  %324 = vmatpush2.msra.mxu0 0.0
  %325 = vmatprep.subr.mxu0 0.0
  %326 = vmatpush2.msra.mxu0 0.0
  %327 = vmatprep.mubr.f32.mxu0 0.0
  %328 = vmatmul.mubr.f32.gmra.mxu0 %v258
  %v329 = vpop.f32.mrf.mxu0
  %v330 = vadd.f32 0.0, %v329
  %v331 = vpop.f32.mrf.mxu0
  %332 = vmatprep.mubr.f32.mxu0 0.0
  %333 = vmatmul.mubr.f32.gmra.mxu0 %v261
  %v334 = vpop.f32.mrf.mxu0
  %v335 = vadd.f32 0.0, %v334
  %v336 = vpop.f32.mrf.mxu0
  %337 = vdwg.mxu0
  %338 = vadd.xlane.f32.xlu0 %v330
  %v339 = vpop.xlane.xlu0 %338
  %340 = vadd.xlane.f32.xlu0 %v335
  %v341 = vpop.xlane.xlu0 %340
  %v342 = vmul.f32 %v339, 0.001953125
  %v343 = vmul.f32 %v341, 0.001953125
  %v344 = vsub.f32 %v248, %v342
  %v345 = vsub.f32 %v251, %v343
  %v346 = vmul.f32 %v344, %v344
  %v347 = vmul.f32 %v345, %v345
  %348 = vmatprep.subr.mxu0 0.0
  %349 = vmatpush1.msra.mxu0 0.0
  %350 = vmatprep.subr.mxu0 0.0
  %351 = vmatpush1.msra.mxu0 0.0
  %352 = vmatprep.subr.mxu0 0.0
  %353 = vmatpush1.msra.mxu0 0.0
  %354 = vmatprep.subr.mxu0 0.0
  %355 = vmatpush1.msra.mxu0 0.0
  %356 = vmatprep.subr.mxu0 0.0
  %357 = vmatpush1.msra.mxu0 0.0
  %358 = vmatprep.subr.mxu0 0.0
  %359 = vmatpush1.msra.mxu0 0.0
  %360 = vmatprep.subr.mxu0 0.0
  %361 = vmatpush1.msra.mxu0 0.0
  %362 = vmatprep.subr.mxu0 0.0
  %363 = vmatpush1.msra.mxu0 0.0
  %364 = vmatprep.subr.mxu0 0.0
  %365 = vmatpush1.msra.mxu0 0.0
  %366 = vmatprep.subr.mxu0 0.0
  %367 = vmatpush1.msra.mxu0 0.0
  %368 = vmatprep.subr.mxu0 0.0
  %369 = vmatpush1.msra.mxu0 0.0
  %370 = vmatprep.subr.mxu0 0.0
  %371 = vmatpush1.msra.mxu0 0.0
  %372 = vmatprep.subr.mxu0 0.0
  %373 = vmatpush1.msra.mxu0 0.0
  %374 = vmatprep.subr.mxu0 0.0
  %375 = vmatpush1.msra.mxu0 0.0
  %376 = vmatprep.subr.mxu0 0.0
  %377 = vmatpush1.msra.mxu0 %v347
  %378 = vmatprep.subr.mxu0 0.0
  %379 = vmatpush1.msra.mxu0 %v346
  %380 = vmatprep.subr.mxu0 0.0
  %381 = vmatpush2.msra.mxu0 0.0
  %382 = vmatprep.subr.mxu0 0.0
  %383 = vmatpush2.msra.mxu0 0.0
  %384 = vmatprep.subr.mxu0 0.0
  %385 = vmatpush2.msra.mxu0 0.0
  %386 = vmatprep.subr.mxu0 0.0
  %387 = vmatpush2.msra.mxu0 0.0
  %388 = vmatprep.subr.mxu0 0.0
  %389 = vmatpush2.msra.mxu0 0.0
  %390 = vmatprep.subr.mxu0 0.0
  %391 = vmatpush2.msra.mxu0 0.0
  %392 = vmatprep.subr.mxu0 0.0
  %393 = vmatpush2.msra.mxu0 0.0
  %394 = vmatprep.subr.mxu0 0.0
  %395 = vmatpush2.msra.mxu0 0.0
  %396 = vmatprep.subr.mxu0 0.0
  %397 = vmatpush2.msra.mxu0 0.0
  %398 = vmatprep.subr.mxu0 0.0
  %399 = vmatpush2.msra.mxu0 0.0
  %400 = vmatprep.subr.mxu0 0.0
  %401 = vmatpush2.msra.mxu0 0.0
  %402 = vmatprep.subr.mxu0 0.0
  %403 = vmatpush2.msra.mxu0 0.0
  %404 = vmatprep.subr.mxu0 0.0
  %405 = vmatpush2.msra.mxu0 0.0
  %406 = vmatprep.subr.mxu0 0.0
  %407 = vmatpush2.msra.mxu0 0.0
  %408 = vmatprep.subr.mxu0 0.0
  %409 = vmatpush2.msra.mxu0 0.0
  %410 = vmatprep.subr.mxu0 0.0
  %411 = vmatpush2.msra.mxu0 0.0
  %412 = vmatprep.mubr.f32.mxu0 0.0
  %413 = vmatmul.mubr.f32.gmra.mxu0 %v258
  %v414 = vpop.f32.mrf.mxu0
  %v415 = vadd.f32 0.0, %v414
  %v416 = vpop.f32.mrf.mxu0
  %417 = vmatprep.mubr.f32.mxu0 0.0
  %418 = vmatmul.mubr.f32.gmra.mxu0 %v261
  %v419 = vpop.f32.mrf.mxu0
  %v420 = vadd.f32 0.0, %v419
  %v421 = vpop.f32.mrf.mxu0
  %422 = vdwg.mxu0
  %423 = vadd.xlane.f32.xlu0 %v415
  %v424 = vpop.xlane.xlu0 %423
  %425 = vadd.xlane.f32.xlu0 %v420
  %v426 = vpop.xlane.xlu0 %425
  %v427 = vmul.f32 %v424, 0.001953125
  %v428 = vmul.f32 %v426, 0.001953125
  %v429 = vadd.f32 %v427, 1e-05
  %v430 = vadd.f32 %v428, 1e-05
  %v431 = vrsqrt.pop %v429
  %v432 = vrsqrt.pop %v430
  %v433 = vmul.f32 %v344, %v431
  %v434 = vmul.f32 %v345, %v432
  %v435 = vld [vmem:[%s5] sm:$0xff]
  %v436 = vld [vmem:[%s5 + $0x8] sm:$0xff]
  %438 = vset.pattern.permute.xlu0 0
  %439 = vperm.xlu0 %438, %v435
  %v440 = vpop.permute.xlu0 %439
  %443 = vset.pattern.permute.xlu0 0
  %444 = vperm.xlu0 %443, %v436
  %v445 = vpop.permute.xlu0 %444
  %v447 = vmul.f32 %v433, %v440
  %v448 = vmul.f32 %v434, %v445
  %v449 = vld [vmem:[%s6] sm:$0xff]
  %v450 = vld [vmem:[%s6 + $0x8] sm:$0xff]
  %452 = vset.pattern.permute.xlu0 0
  %453 = vperm.xlu0 %452, %v449
  %v454 = vpop.permute.xlu0 %453
  %457 = vset.pattern.permute.xlu0 0
  %458 = vperm.xlu0 %457, %v450
  %v459 = vpop.permute.xlu0 %458
  %v461 = vadd.f32 %v447, %v454
  %v462 = vadd.f32 %v448, %v459
  %463 = vst [vmem:[%s7] sm:$0xff] %v461
  %464 = vst [vmem:[%s7 + $0x8] sm:$0xff] %v462
  // Predicated region
  $region30: #{block_innermost_forward.1} parent=0 // pred_check
    _
  $region31: #{block_innermost_forward.1} parent=0 // pred_check_branch
    %466 = sbr.rel (0) target = $region33
  $region32: #{block_innermost_forward.1} parent=0 // pred_region
    _
  $region33: #{block_innermost_forward.1} parent=0 // pred_fallthru
    _
  // Predicated region
  $region34: #{block_innermost_forward.1} parent=0 // pred_check
    _
  $region35: #{block_innermost_forward.1} parent=0 // pred_check_branch
    %468 = sbr.rel (0) target = $region37
  $region36: #{block_innermost_forward.1} parent=0 // pred_region
    _
  $region37: #{block_innermost_forward.1} parent=0 // pred_fallthru
    _

</llo_original>
